<compile_context>
chip_gen: v6e
topology: v6e:2x2x1
jax: 0.10.0
libtpu: 0.0.40
codegen_flags: <defaults>
</compile_context>

<pallas_src>
import math
import functools

import numpy as np
import jax
import jax.numpy as jnp
from jax import lax
from jax.experimental import pallas as pl
from jax.experimental.pallas import tpu as pltpu


def _round_up(x, m):
    return (x + m - 1) // m * m


def _gat_hidden_kernel(mask_ref, x_ref, agg_rhs_ref, expand_ref, wx_ref, b1_ref,
                       hid_ref, *, hod, n_heads):
    """Pass 1 (one row tile, all heads): masked softmax aggregation + lin1 + ReLU.

    agg_rhs columns: [0, HOD)      per-head exp(a2_h) * (x @ Wobj_h)
                     [HOD, HOD+H)  per-head exp(a2_h)   (softmax denominators)
                     rest           zero padding to 128 lanes.
    """
    # int8 {0,1} mask -> f32 -> bf16, hoisted once and shared by all heads
    # (guaranteed-supported convert chain; keeps elementwise math off bf16 on
    #  v5e while feeding the MXU its bf16-native operand).
    mask_bf = mask_ref[...].astype(jnp.float32).astype(jnp.bfloat16)       # (T, N)

    # Single MXU call does the whole N^2 work for every head.
    agg = jnp.dot(mask_bf, agg_rhs_ref[...],
                  preferred_element_type=jnp.float32)                      # (T, W)

    # Per-head softmax denominators -> reciprocals (tiny (T,H) slab; exact).
    rec = pl.reciprocal(agg[:, hod:hod + n_heads], approx=False)           # (T, H)
    # Expand to the head-blocked lane layout with a tiny MXU matmul instead of
    # sub-128-lane slicing/concat; pad + denominator lanes map to 0.
    rec_full = jnp.dot(rec, expand_ref[...],
                       preferred_element_type=jnp.float32)                 # (T, W)
    obj = agg * rec_full                                                   # (T, W)

    # x-part of lin1 (head-batched, lane-dense) + obj part + bias, ReLU.
    hid = jnp.dot(x_ref[...], wx_ref[...], preferred_element_type=jnp.float32)
    hid_ref[...] = jnp.maximum(hid + obj + b1_ref[...], 0.0).astype(hid_ref.dtype)


def _gat_out_kernel(hid_ref, scale_ref, shift_ref, w2_ref, b2_ref, out_ref):
    """Pass 2: folded BatchNorm affine + head-batched (block-diagonal) lin2."""
    h = hid_ref[...].astype(jnp.float32) * scale_ref[...] + shift_ref[...]
    out_ref[...] = (jnp.dot(h, w2_ref[...], preferred_element_type=jnp.float32)
                    + b2_ref[...]).astype(out_ref.dtype)


def gat_conv_pallas(x, mask, params, *, n_heads, out_dim_h, tile_n=None):
    """GATConv forward.  x: (N, D) f32, mask: (N, N) {0,1} (edge row->col).
    Returns (N, n_heads * out_dim_h) in the PyTorch output layout."""
    N, D = x.shape
    H, od = n_heads, out_dim_h
    HOD = H * od
    W = _round_up(HOD + H, 128)            # lane-dense padded width
    w1, w2, wm1, bm1, gamma, beta, wm2, bm2 = params
    # w1 (a1) cancels exactly in the per-row softmax -> no effect on the forward.
    del w1
    f32 = jnp.float32

    # ---- wrapper-side prep (small O(N*D*HOD) XLA ops, once per call) -------
    inv_sqrt = 1.0 / math.sqrt(od)
    a2 = (x @ w2) * inv_sqrt                                         # (N, H)
    exp_a2 = jnp.exp(a2 - jnp.max(a2, axis=0, keepdims=True))        # (N, H)

    # Fold per-head obj weights of lin1 into x, pre-scale by exp(a2).
    xw = jnp.concatenate([x @ wm1[h, D:, :] for h in range(H)], axis=1)     # (N, HOD)
    agg_rhs = jnp.zeros((N, W), f32)
    agg_rhs = agg_rhs.at[:, :HOD].set(xw * jnp.repeat(exp_a2, od, axis=1))
    agg_rhs = agg_rhs.at[:, HOD:HOD + H].set(exp_a2)
    agg_rhs = agg_rhs.astype(jnp.bfloat16)        # MXU-native, halves VMEM/HBM

    # Head -> lane-block expansion matrix for the denominator reciprocals.
    col = jnp.arange(W)
    expand = jnp.where((col[None, :] // od == jnp.arange(H)[:, None])
                       & (col[None, :] < HOD), 1.0, 0.0).astype(f32)        # (H, W)

    wx = jnp.zeros((D, W), f32).at[:, :HOD].set(
        jnp.concatenate([wm1[h, :D, :] for h in range(H)], axis=1))
    b1 = jnp.zeros((1, W), f32).at[:, :HOD].set(bm1.reshape(1, HOD))

    mask_i8 = (mask > 0).astype(jnp.int8)                                   # (N, N)
    # TODO(synk): rows with zero edges hit a zero softmax denominator here;
    # the PyTorch scatter-softmax simply emits nothing for isolated nodes.
    # Every row is assumed to carry at least one edge (e.g. a self loop).
    # TODO(synk): very large N would additionally want in-kernel column
    # chunking of the mask matmul; graphs here are small enough not to.

    # ---- row tile / VMEM accounting (includes in-kernel temporaries) -------
    try:
        vmem_cap = int(pltpu.get_tpu_info().vmem_capacity_bytes)
    except Exception:
        vmem_cap = 64 << 20                 # conservative (v7x per-TC)
    invariant = N * W * 2 + (D + H + 1) * W * 4          # agg_rhs, wx, expand, b1
    per_row = (2 * N * 1                    # int8 mask tile, double-buffered
               + N * 4 + N * 2              # f32 + bf16 mask temporaries
               + 4 * W * 4                  # agg / rec_full / obj / hid f32 temps
               + 2 * D * 4                  # x tile, double-buffered
               + 2 * W * 2)                 # hid output tile, double-buffered bf16
    if tile_n is None:
        budget = int(0.6 * vmem_cap) - 2 * invariant
        tile_n = N
        for cand in (1024, 512, 256, 128, 64, 32):
            if cand <= N and N % cand == 0 and cand * per_row <= budget:
                tile_n = cand
                break
    assert N % tile_n == 0, (N, tile_n)
    num_tiles = N // tile_n
    vmem_limit = int(min(max(2 * invariant + tile_n * per_row + (4 << 20), 32 << 20),
                         vmem_cap - (4 << 20)))

    cost1 = pl.CostEstimate(
        flops=int(2 * N * N * W             # mask @ agg_rhs (all heads + denoms)
                  + 2 * N * D * W           # x @ wx
                  + 2 * N * H * W           # reciprocal expansion matmul
                  + 6 * N * W),             # elementwise
        transcendentals=0,                  # exp hoisted to wrapper (O(N*H))
        bytes_accessed=int(N * N             # int8 mask
                           + N * D * 4 + N * W * 2 + N * W * 2
                           + (D + H + 1) * W * 4))

    hid = pl.pallas_call(
        functools.partial(_gat_hidden_kernel, hod=HOD, n_heads=H),
        out_shape=jax.ShapeDtypeStruct((N, W), jnp.bfloat16),
        grid=(num_tiles,),
        in_specs=[
            pl.BlockSpec((tile_n, N), lambda i: (i, 0)),   # int8 mask rows
            pl.BlockSpec((tile_n, D), lambda i: (i, 0)),   # x rows (this tile)
            pl.BlockSpec((N, W), lambda i: (0, 0)),        # agg rhs (grid-invariant)
            pl.BlockSpec((H, W), lambda i: (0, 0)),        # head->lane expansion
            pl.BlockSpec((D, W), lambda i: (0, 0)),        # lin1 W (x part)
            pl.BlockSpec((1, W), lambda i: (0, 0)),        # lin1 bias
        ],
        out_specs=pl.BlockSpec((tile_n, W), lambda i: (i, 0)),
        compiler_params=pltpu.CompilerParams(
            dimension_semantics=("parallel",),             # no revisited outputs
            vmem_limit_bytes=vmem_limit),
        cost_estimate=cost1,
    )(mask_i8, x, agg_rhs, expand, wx, b1)

    # BatchNorm1d statistics (training mode, biased variance) over all nodes,
    # computed wrapper-side from the small (N, W) hid slab so pass 1 stays
    # megacore-parallel (no cross-tile accumulator races on v7x's 2 TCs).
    hidf = hid.astype(f32)
    mean = jnp.mean(hidf, axis=0, keepdims=True)
    var = jnp.maximum(jnp.var(hidf, axis=0, keepdims=True), 0.0)
    rstd = lax.rsqrt(var + 1e-5)
    gam = jnp.zeros((1, W), f32).at[:, :HOD].set(gamma.reshape(1, HOD))
    bet = jnp.zeros((1, W), f32).at[:, :HOD].set(beta.reshape(1, HOD))
    scale = gam * rstd
    shift = bet - mean * scale

    # Head-batched lin2 laid out block-diagonally on the padded lane width
    # (padded rows/cols are zero -> padded output columns stay exactly zero).
    w2bd = jnp.zeros((W, W), f32)
    for h in range(H):
        w2bd = w2bd.at[h * od:(h + 1) * od, h * od:(h + 1) * od].set(wm2[h])
    b2 = jnp.zeros((1, W), f32).at[:, :HOD].set(bm2.reshape(1, HOD))

    out = pl.pallas_call(
        _gat_out_kernel,
        out_shape=jax.ShapeDtypeStruct((N, W), f32),
        grid=(num_tiles,),
        in_specs=[
            pl.BlockSpec((tile_n, W), lambda i: (i, 0)),
            pl.BlockSpec((1, W), lambda i: (0, 0)),
            pl.BlockSpec((1, W), lambda i: (0, 0)),
            pl.BlockSpec((W, W), lambda i: (0, 0)),
            pl.BlockSpec((1, W), lambda i: (0, 0)),
        ],
        out_specs=pl.BlockSpec((tile_n, W), lambda i: (i, 0)),
        compiler_params=pltpu.CompilerParams(
            dimension_semantics=("parallel",),
            vmem_limit_bytes=32 << 20),
    )(hid, scale, shift, w2bd, b2)
    return out[:, :HOD]


def gat_conv_reference(x, mask, params, *, n_heads, out_dim_h):
    """Pure-JAX reference (mirrors the PyTorch forward) for correctness."""
    N, D = x.shape
    w1, w2, wm1, bm1, gamma, beta, wm2, bm2 = params
    attn1 = x @ w1
    attn2 = x @ w2
    outs = []
    for h in range(n_heads):
        logits = (attn1[:, h:h + 1] + attn2[:, h][None, :]) / math.sqrt(out_dim_h)
        neg = jnp.where(mask > 0, logits, -1e30)
        e = jnp.exp(neg - neg.max(axis=1, keepdims=True)) * mask
        p = e / e.sum(axis=1, keepdims=True)
        x_obj = p @ x
        z = jnp.concatenate([x, x_obj], axis=1)
        hid = jnp.maximum(z @ wm1[h] + bm1[h, 0], 0.0)
        mean = hid.mean(axis=0)
        var = ((hid - mean) ** 2).mean(axis=0)
        hid = (hid - mean) / jnp.sqrt(var + 1e-5) * gamma[h, 0] + beta[h, 0]
        outs.append(hid @ wm2[h] + bm2[h, 0])
    return jnp.concatenate(outs, axis=1)


if __name__ == "__main__":
    # Small shapes consistent with the module: N nodes, in_dim features,
    # out_dim total output dim split across n_heads heads.
    N = 64
    in_dim = 16
    out_dim = 32
    n_heads = 2
    out_dim_h = out_dim // n_heads

    key = jax.random.PRNGKey(0)
    keys = jax.random.split(key, 10)

    x = jax.random.normal(keys[0], (N, in_dim), dtype=jnp.float32)

    # Deterministic sparse graph: self loop + 3 neighbours per node.
    rows, cols = [], []
    for i in range(N):
        for j in (i, (i + 1) % N, (i + 3) % N, (i + 7) % N):
            rows.append(i)
            cols.append(j)
    rows = np.asarray(rows, dtype=np.int32)
    cols = np.asarray(cols, dtype=np.int32)
    mask = jnp.zeros((N, N), dtype=jnp.float32).at[rows, cols].set(1.0)

    # Deterministic parameter init (shapes from GATConv.__init__, edge_dim=0,
    # layer_mlp=2).  Stored pre-transposed so forward is x @ W.
    w1 = 0.2 * jax.random.normal(keys[1], (in_dim, n_heads), dtype=jnp.float32)
    w2 = 0.2 * jax.random.normal(keys[2], (in_dim, n_heads), dtype=jnp.float32)
    wm1 = 0.2 * jax.random.normal(keys[3], (n_heads, 2 * in_dim, out_dim_h), dtype=jnp.float32)
    bm1 = 0.1 * jax.random.normal(keys[4], (n_heads, 1, out_dim_h), dtype=jnp.float32)
    gamma = 1.0 + 0.1 * jax.random.normal(keys[5], (n_heads, 1, out_dim_h), dtype=jnp.float32)
    beta = 0.1 * jax.random.normal(keys[6], (n_heads, 1, out_dim_h), dtype=jnp.float32)
    wm2 = 0.2 * jax.random.normal(keys[7], (n_heads, out_dim_h, out_dim_h), dtype=jnp.float32)
    bm2 = 0.1 * jax.random.normal(keys[8], (n_heads, 1, out_dim_h), dtype=jnp.float32)
    params = (w1, w2, wm1, bm1, gamma, beta, wm2, bm2)

    # tile_n=32 forces a multi-tile grid (int8-aligned sublane count) so the
    # row-tiled, megacore-parallel path is exercised even at this small N.
    out = gat_conv_pallas(x, mask, params, n_heads=n_heads, out_dim_h=out_dim_h,
                          tile_n=32)
    out = jax.block_until_ready(out)

    ref = gat_conv_reference(x, mask, params, n_heads=n_heads, out_dim_h=out_dim_h)
    ref = jax.block_until_ready(ref)

    assert out.shape == (N, n_heads * out_dim_h), out.shape
    # bf16 aggregation matmul + bf16 inter-pass hid -> bf16-class tolerance.
    np.testing.assert_allclose(np.asarray(out), np.asarray(ref), rtol=3e-2, atol=3e-2)

    print("KERNEL_OK")
</pallas_src>

<mosaic_0001>
module attributes {stable_mosaic.version = 11 : i64} {
  func.func @_gat_hidden_kernel(%arg0: i32, %arg1: memref<32x64xi8, #tpu.memory_space<vmem>>, %arg2: memref<32x16xf32, #tpu.memory_space<vmem>>, %arg3: memref<64x128xbf16, #tpu.memory_space<vmem>>, %arg4: memref<2x128xf32, #tpu.memory_space<vmem>>, %arg5: memref<16x128xf32, #tpu.memory_space<vmem>>, %arg6: memref<1x128xf32, #tpu.memory_space<vmem>>, %arg7: memref<32x128xbf16, #tpu.memory_space<vmem>>) attributes {dimension_semantics = [#tpu.dimension_semantics<parallel>], iteration_bounds = array<i64: 2>, scalar_prefetch = 0 : i64, scratch_operands = 0 : i64, tpu.core_type = #tpu.core_type<tc>, window_params = [{transform_indices = @transform_0, window_bounds = array<i64: 32, 64>}, {transform_indices = @transform_1, window_bounds = array<i64: 32, 16>}, {pipeline_mode = #tpu.pipeline_mode<synchronous>, transform_indices = @transform_2, window_bounds = array<i64: 64, 128>}, {pipeline_mode = #tpu.pipeline_mode<synchronous>, transform_indices = @transform_3, window_bounds = array<i64: 2, 128>}, {pipeline_mode = #tpu.pipeline_mode<synchronous>, transform_indices = @transform_4, window_bounds = array<i64: 16, 128>}, {pipeline_mode = #tpu.pipeline_mode<synchronous>, transform_indices = @transform_5, window_bounds = array<i64: 1, 128>}, {transform_indices = @transform_6, window_bounds = array<i64: 32, 128>}]} {
    %c0 = arith.constant 0 : index
    %c0_0 = arith.constant 0 : index
    %0 = vector.load %arg1[%c0, %c0_0] : memref<32x64xi8, #tpu.memory_space<vmem>>, vector<32x64xi8>
    %1 = arith.sitofp %0 : vector<32x64xi8> to vector<32x64xf32>
    %2 = arith.truncf %1 : vector<32x64xf32> to vector<32x64xbf16>
    %c0_1 = arith.constant 0 : index
    %c0_2 = arith.constant 0 : index
    %3 = vector.load %arg3[%c0_1, %c0_2] : memref<64x128xbf16, #tpu.memory_space<vmem>>, vector<64x128xbf16>
    %cst = arith.constant dense<0.000000e+00> : vector<32x128xf32>
    %4 = tpu.matmul %2, %3, %cst {dimension_numbers = #tpu.dot_dimension_numbers<[1], [0], [0], [1], [0, 0, 1, 1], [], []>} : vector<32x64xbf16>, vector<64x128xbf16>, vector<32x128xf32> -> vector<32x128xf32>
    %5 = vector.extract_strided_slice %4 {offsets = [0, 32], sizes = [32, 2], strides = [1, 1]} : vector<32x128xf32> to vector<32x2xf32>
    %6 = tpu.reciprocal %5 : vector<32x2xf32> -> vector<32x2xf32>
    %c0_3 = arith.constant 0 : index
    %c0_4 = arith.constant 0 : index
    %7 = vector.load %arg4[%c0_3, %c0_4] : memref<2x128xf32, #tpu.memory_space<vmem>>, vector<2x128xf32>
    %cst_5 = arith.constant dense<0.000000e+00> : vector<32x128xf32>
    %8 = tpu.matmul %6, %7, %cst_5 {dimension_numbers = #tpu.dot_dimension_numbers<[1], [0], [0], [1], [0, 0, 1, 1], [], []>} : vector<32x2xf32>, vector<2x128xf32>, vector<32x128xf32> -> vector<32x128xf32>
    %9 = arith.mulf %4, %8 : vector<32x128xf32>
    %c0_6 = arith.constant 0 : index
    %c0_7 = arith.constant 0 : index
    %10 = vector.load %arg2[%c0_6, %c0_7] : memref<32x16xf32, #tpu.memory_space<vmem>>, vector<32x16xf32>
    %c0_8 = arith.constant 0 : index
    %c0_9 = arith.constant 0 : index
    %11 = vector.load %arg5[%c0_8, %c0_9] : memref<16x128xf32, #tpu.memory_space<vmem>>, vector<16x128xf32>
    %cst_10 = arith.constant dense<0.000000e+00> : vector<32x128xf32>
    %12 = tpu.matmul %10, %11, %cst_10 {dimension_numbers = #tpu.dot_dimension_numbers<[1], [0], [0], [1], [0, 0, 1, 1], [], []>} : vector<32x16xf32>, vector<16x128xf32>, vector<32x128xf32> -> vector<32x128xf32>
    %13 = arith.addf %12, %9 : vector<32x128xf32>
    %c0_11 = arith.constant 0 : index
    %c0_12 = arith.constant 0 : index
    %14 = vector.load %arg6[%c0_11, %c0_12] : memref<1x128xf32, #tpu.memory_space<vmem>>, vector<1x128xf32>
    %15 = vector.broadcast %14 : vector<1x128xf32> to vector<32x128xf32>
    %16 = arith.addf %13, %15 : vector<32x128xf32>
    %cst_13 = arith.constant 0.000000e+00 : f32
    %17 = vector.broadcast %cst_13 : f32 to vector<32x128xf32>
    %18 = arith.maximumf %16, %17 : vector<32x128xf32>
    %19 = arith.truncf %18 : vector<32x128xf32> to vector<32x128xbf16>
    %c0_14 = arith.constant 0 : index
    %c0_15 = arith.constant 0 : index
    %20 = vector.load %arg7[%c0_14, %c0_15] : memref<32x128xbf16, #tpu.memory_space<vmem>>, vector<32x128xbf16>
    tpu.vector_store %arg7[%c0_14, %c0_15], %19 {strides = array<i32>} : memref<32x128xbf16, #tpu.memory_space<vmem>>, vector<32x128xbf16>,
    return
  }
  func.func @transform_0(%arg0: i32) -> (i32, i32) {
    %c0_i32 = arith.constant 0 : i32
    %c0_i32_0 = arith.constant 0 : i32
    return %arg0, %c0_i32 : i32, i32
  }
  func.func @transform_1(%arg0: i32) -> (i32, i32) {
    %c0_i32 = arith.constant 0 : i32
    %c0_i32_0 = arith.constant 0 : i32
    return %arg0, %c0_i32 : i32, i32
  }
  func.func @transform_2(%arg0: i32) -> (i32, i32) {
    %c0_i32 = arith.constant 0 : i32
    %c0_i32_0 = arith.constant 0 : i32
    %c0_i32_1 = arith.constant 0 : i32
    return %c0_i32, %c0_i32_0 : i32, i32
  }
  func.func @transform_3(%arg0: i32) -> (i32, i32) {
    %c0_i32 = arith.constant 0 : i32
    %c0_i32_0 = arith.constant 0 : i32
    %c0_i32_1 = arith.constant 0 : i32
    return %c0_i32, %c0_i32_0 : i32, i32
  }
  func.func @transform_4(%arg0: i32) -> (i32, i32) {
    %c0_i32 = arith.constant 0 : i32
    %c0_i32_0 = arith.constant 0 : i32
    %c0_i32_1 = arith.constant 0 : i32
    return %c0_i32, %c0_i32_0 : i32, i32
  }
  func.func @transform_5(%arg0: i32) -> (i32, i32) {
    %c0_i32 = arith.constant 0 : i32
    %c0_i32_0 = arith.constant 0 : i32
    %c0_i32_1 = arith.constant 0 : i32
    return %c0_i32, %c0_i32_0 : i32, i32
  }
  func.func @transform_6(%arg0: i32) -> (i32, i32) {
    %c0_i32 = arith.constant 0 : i32
    %c0_i32_0 = arith.constant 0 : i32
    return %arg0, %c0_i32 : i32, i32
  }
}

</mosaic_0001>

<llo_original>
// kernel: tpu_custom_call.1
$region0: #{tpu_custom_call.1}
  #allocation0 [shape = 'u32[]', space=smem, size = 0x4, offset = 0x4, fixed_abs, tag = 'smem constant byte address 0x4 - core index']
  #allocation1 [shape = 'u32[144,128]{1,0:T(1,128)}', space=vmem, size = 0x12000, scoped, tag = 'internal scratch']
  %s0 = inlined_call_operand.vmem [shape: s8[64,64], index: 0, kind: input, shape index: {}]
  %s1 = inlined_call_operand.vmem [shape: f32[64,16], index: 1, kind: input, shape index: {}]
  %s2 = inlined_call_operand.vmem [shape: bf16[64,128], index: 2, kind: input, shape index: {}]
  %s3 = inlined_call_operand.vmem [shape: f32[2,128], index: 3, kind: input, shape index: {}]
  %s4 = inlined_call_operand.vmem [shape: f32[16,128], index: 4, kind: input, shape index: {}]
  %s5 = inlined_call_operand.vmem [shape: f32[1,128], index: 5, kind: input, shape index: {}]
  %s6 = inlined_call_operand.hbm [shape: bf16[64,128], index: 6, kind: output, shape index: {}]
  %s7 = sld [smem:[#allocation0]]
  $region57: #{tpu_custom_call.1} parent=0
    _
  %s9 = ssub.s32 1, %s7
  %s10 = scalar_select 0, %s9, %s7
  $region1: #{tpu_custom_call.1} parent=0
    #allocation2 [shape = 'u8[16384]{0}', space=vmem, size = 0x4000, scoped, tag = 'output window, operand 0']
    #allocation3 [shape = 's32[2]{0}', space=sflag, size = 0x8, scoped, tag = 'scoped memory for tpu_custom_call.1']
    %11 = vsyncpa [#allocation3], 0
    %s12 = scalar_lea.sflag [#allocation3], 1
    %13 = vsyncpa %s12, 0
    loop: start=0, step=1, limit=4
    $region2: #{tpu_custom_call.1} parent=1 // loop_pre_header
      _
    $region3: #{tpu_custom_call.1} parent=1 // loop_header
      %s15 = sphi 0, %s19
      %p16 = scmp.ge.s32.totalorder %s15, 4
      %s25 = sphi 0, %s27
      %s28 = sphi 0, %s25
      %s29 = sphi 0, %s28
      %s45 = sphi 0, %s29
      %s51 = sphi 0, %s53
      %s54 = sphi 0, %s51
      %s55 = sphi 0, %s54
      %s71 = sphi 0, %s55
      %s75 = sphi 0, %s75
      %s77 = sphi 0, %s75
      %s78 = sphi 0, %s77
      %s92 = sphi 0, %s78
      %s96 = sphi 0, %s96
      %s98 = sphi 0, %s96
      %s99 = sphi 0, %s98
      %s113 = sphi 0, %s99
      %s117 = sphi 0, %s117
      %s119 = sphi 0, %s117
      %s120 = sphi 0, %s119
      %s134 = sphi 0, %s120
      %s138 = sphi 0, %s138
      %s140 = sphi 0, %s138
      %s141 = sphi 0, %s140
      %s155 = sphi 0, %s141
      %s161 = sphi 0, %s163
      %s164 = sphi 0, %s161
      %s165 = sphi 0, %s164
      %s181 = sphi 0, %s165
    $region4: #{tpu_custom_call.1} parent=1 // loop_header_branch
      %18 = sbr.rel (%p16) target = $region8
    $region5: #{tpu_custom_call.1} parent=1 // loop_body
      %s20 = ssub.s32 %s15, 1
      %s21 = ssub.s32 %s15, 2
      %s22 = sadd.s32 %s15, 1
      %s23 = ssub.s32 %s15, %s22
      %p24 = scmp.eq.s32.totalorder %s23, 0
      %s26 = sadd.s32 %s25, 1
      %s27 = scalar_select %p24, %s25, %s26
      %p30 = pneg %p24
      %p31 = scmp.eq.s32.totalorder %s15, 1
      %p32 = por %p30, %p31
      %p33 = scmp.ne.s32.totalorder %s25, %s28
      %p34 = scmp.eq.s32.totalorder %s15, 0
      %p35 = por %p33, %p34
      %p36 = scmp.ne.s32.totalorder %s25, %s28
      %p37 = scmp.eq.s32.totalorder %s20, 1
      %p38 = por %p36, %p37
      %p39 = scmp.ne.s32.totalorder %s28, %s29
      %p40 = scmp.eq.s32.totalorder %s20, 0
      %p41 = por %p39, %p40
      %p42 = scmp.ne.s32.totalorder %s28, %s29
      %p43 = scmp.eq.s32.totalorder %s21, 1
      %p44 = por %p42, %p43
      %p46 = scmp.ne.s32.totalorder %s29, %s45
      %p47 = scmp.eq.s32.totalorder %s21, 0
      %p48 = por %p46, %p47
      %s49 = ssub.s32 %s15, %s22
      %p50 = scmp.eq.s32.totalorder %s49, 0
      %s52 = sadd.s32 %s51, 1
      %s53 = scalar_select %p50, %s51, %s52
      %p56 = pneg %p50
      %p57 = scmp.eq.s32.totalorder %s15, 1
      %p58 = por %p56, %p57
      %p59 = scmp.ne.s32.totalorder %s51, %s54
      %p60 = scmp.eq.s32.totalorder %s15, 0
      %p61 = por %p59, %p60
      %p62 = scmp.ne.s32.totalorder %s51, %s54
      %p63 = scmp.eq.s32.totalorder %s20, 1
      %p64 = por %p62, %p63
      %p65 = scmp.ne.s32.totalorder %s54, %s55
      %p66 = scmp.eq.s32.totalorder %s20, 0
      %p67 = por %p65, %p66
      %p68 = scmp.ne.s32.totalorder %s54, %s55
      %p69 = scmp.eq.s32.totalorder %s21, 1
      %p70 = por %p68, %p69
      %p72 = scmp.ne.s32.totalorder %s55, %s71
      %p73 = scmp.eq.s32.totalorder %s21, 0
      %p74 = por %p72, %p73
      %s76 = sadd.s32 %s75, 1
      %p79 = scmp.eq.s32.totalorder %s15, 1
      %p80 = scmp.ne.s32.totalorder %s75, %s77
      %p81 = scmp.eq.s32.totalorder %s15, 0
      %p82 = por %p80, %p81
      %p83 = scmp.ne.s32.totalorder %s75, %s77
      %p84 = scmp.eq.s32.totalorder %s20, 1
      %p85 = por %p83, %p84
      %p86 = scmp.ne.s32.totalorder %s77, %s78
      %p87 = scmp.eq.s32.totalorder %s20, 0
      %p88 = por %p86, %p87
      %p89 = scmp.ne.s32.totalorder %s77, %s78
      %p90 = scmp.eq.s32.totalorder %s21, 1
      %p91 = por %p89, %p90
      %p93 = scmp.ne.s32.totalorder %s78, %s92
      %p94 = scmp.eq.s32.totalorder %s21, 0
      %p95 = por %p93, %p94
      %s97 = sadd.s32 %s96, 1
      %p100 = scmp.eq.s32.totalorder %s15, 1
      %p101 = scmp.ne.s32.totalorder %s96, %s98
      %p102 = scmp.eq.s32.totalorder %s15, 0
      %p103 = por %p101, %p102
      %p104 = scmp.ne.s32.totalorder %s96, %s98
      %p105 = scmp.eq.s32.totalorder %s20, 1
      %p106 = por %p104, %p105
      %p107 = scmp.ne.s32.totalorder %s98, %s99
      %p108 = scmp.eq.s32.totalorder %s20, 0
      %p109 = por %p107, %p108
      %p110 = scmp.ne.s32.totalorder %s98, %s99
      %p111 = scmp.eq.s32.totalorder %s21, 1
      %p112 = por %p110, %p111
      %p114 = scmp.ne.s32.totalorder %s99, %s113
      %p115 = scmp.eq.s32.totalorder %s21, 0
      %p116 = por %p114, %p115
      %s118 = sadd.s32 %s117, 1
      %p121 = scmp.eq.s32.totalorder %s15, 1
      %p122 = scmp.ne.s32.totalorder %s117, %s119
      %p123 = scmp.eq.s32.totalorder %s15, 0
      %p124 = por %p122, %p123
      %p125 = scmp.ne.s32.totalorder %s117, %s119
      %p126 = scmp.eq.s32.totalorder %s20, 1
      %p127 = por %p125, %p126
      %p128 = scmp.ne.s32.totalorder %s119, %s120
      %p129 = scmp.eq.s32.totalorder %s20, 0
      %p130 = por %p128, %p129
      %p131 = scmp.ne.s32.totalorder %s119, %s120
      %p132 = scmp.eq.s32.totalorder %s21, 1
      %p133 = por %p131, %p132
      %p135 = scmp.ne.s32.totalorder %s120, %s134
      %p136 = scmp.eq.s32.totalorder %s21, 0
      %p137 = por %p135, %p136
      %s139 = sadd.s32 %s138, 1
      %p142 = scmp.eq.s32.totalorder %s15, 1
      %p143 = scmp.ne.s32.totalorder %s138, %s140
      %p144 = scmp.eq.s32.totalorder %s15, 0
      %p145 = por %p143, %p144
      %p146 = scmp.ne.s32.totalorder %s138, %s140
      %p147 = scmp.eq.s32.totalorder %s20, 1
      %p148 = por %p146, %p147
      %p149 = scmp.ne.s32.totalorder %s140, %s141
      %p150 = scmp.eq.s32.totalorder %s20, 0
      %p151 = por %p149, %p150
      %p152 = scmp.ne.s32.totalorder %s140, %s141
      %p153 = scmp.eq.s32.totalorder %s21, 1
      %p154 = por %p152, %p153
      %p156 = scmp.ne.s32.totalorder %s141, %s155
      %p157 = scmp.eq.s32.totalorder %s21, 0
      %p158 = por %p156, %p157
      %s159 = ssub.s32 %s15, %s22
      %p160 = scmp.eq.s32.totalorder %s159, 0
      %s162 = sadd.s32 %s161, 1
      %s163 = scalar_select %p160, %s161, %s162
      %p166 = pneg %p160
      %p167 = scmp.eq.s32.totalorder %s15, 1
      %p168 = por %p166, %p167
      %p169 = scmp.ne.s32.totalorder %s161, %s164
      %p170 = scmp.eq.s32.totalorder %s15, 0
      %p171 = por %p169, %p170
      %p172 = scmp.ne.s32.totalorder %s161, %s164
      %p173 = scmp.eq.s32.totalorder %s20, 1
      %p174 = por %p172, %p173
      %p175 = scmp.ne.s32.totalorder %s164, %s165
      %p176 = scmp.eq.s32.totalorder %s20, 0
      %p177 = por %p175, %p176
      %p178 = scmp.ne.s32.totalorder %s164, %s165
      %p179 = scmp.eq.s32.totalorder %s21, 1
      %p180 = por %p178, %p179
      %p182 = scmp.ne.s32.totalorder %s165, %s181
      %p183 = scmp.eq.s32.totalorder %s21, 0
      %p184 = por %p182, %p183
      %p185 = scmp.le.s32.totalorder 1, %s15
      %p186 = scmp.lt.s32.totalorder %s15, 3
      %p187 = pnand %p185, %p186
      %p188 = pneg %p187
      // Predicated region
      $region9: #{tpu_custom_call.1} parent=5 // pred_check
        _
      $region10: #{tpu_custom_call.1} parent=5 // pred_check_branch
        %190 = sbr.rel (%p187) target = $region12
      $region11: #{tpu_custom_call.1} parent=5 // pred_region
        %s191 = ssub.s32 %s15, 1
        // Predicated region
        $region13: #{tpu_custom_call.1} parent=11 // pred_check
          %p192 = pneg %p88
        $region14: #{tpu_custom_call.1} parent=11 // pred_check_branch
          %194 = sbr.rel (%p192) target = $region16
        $region15: #{tpu_custom_call.1} parent=11 // pred_region
          _
        $region16: #{tpu_custom_call.1} parent=11 // pred_fallthru
          _
        // Predicated region
        $region17: #{tpu_custom_call.1} parent=11 // pred_check
          %p195 = pneg %p109
        $region18: #{tpu_custom_call.1} parent=11 // pred_check_branch
          %197 = sbr.rel (%p195) target = $region20
        $region19: #{tpu_custom_call.1} parent=11 // pred_region
          _
        $region20: #{tpu_custom_call.1} parent=11 // pred_fallthru
          _
        // Predicated region
        $region21: #{tpu_custom_call.1} parent=11 // pred_check
          %p198 = pneg %p130
        $region22: #{tpu_custom_call.1} parent=11 // pred_check_branch
          %200 = sbr.rel (%p198) target = $region24
        $region23: #{tpu_custom_call.1} parent=11 // pred_region
          _
        $region24: #{tpu_custom_call.1} parent=11 // pred_fallthru
          _
        // Predicated region
        $region25: #{tpu_custom_call.1} parent=11 // pred_check
          %p201 = pneg %p151
        $region26: #{tpu_custom_call.1} parent=11 // pred_check_branch
          %203 = sbr.rel (%p201) target = $region28
        $region27: #{tpu_custom_call.1} parent=11 // pred_region
          _
        $region28: #{tpu_custom_call.1} parent=11 // pred_fallthru
          _
      $region12: #{tpu_custom_call.1} parent=5 // pred_fallthru
        _
      %p204 = scmp.lt.s32.totalorder %s15, 2
      // Predicated region
      $region29: #{tpu_custom_call.1} parent=5 // pred_check
        %p205 = pneg %p204
      $region30: #{tpu_custom_call.1} parent=5 // pred_check_branch
        %207 = sbr.rel (%p205) target = $region32
      $region31: #{tpu_custom_call.1} parent=5 // pred_region
        // Predicated region
        $region33: #{tpu_custom_call.1} parent=31 // pred_check
          %p208 = pneg %p35
        $region34: #{tpu_custom_call.1} parent=31 // pred_check_branch
          %210 = sbr.rel (%p208) target = $region36
        $region35: #{tpu_custom_call.1} parent=31 // pred_region
          %p211 = scmp.lt.s32.totalorder %s15, 1
          %s212 = scalar_select %p211, %s15, 1
          %s213 = smul.addr %s212, 8
          %s214 = scalar_lea.vmem %s0, %s213
        $region36: #{tpu_custom_call.1} parent=31 // pred_fallthru
          _
        // Predicated region
        $region37: #{tpu_custom_call.1} parent=31 // pred_check
          %p215 = pneg %p61
        $region38: #{tpu_custom_call.1} parent=31 // pred_check_branch
          %217 = sbr.rel (%p215) target = $region40
        $region39: #{tpu_custom_call.1} parent=31 // pred_region
          %s218 = smul.u32 4, %s15
          %p219 = scmp.lt.s32.totalorder %s218, 7
          %s220 = scalar_select %p219, %s218, 7
          %s221 = smul.addr %s220, 8
          %s222 = scalar_lea.vmem %s1, %s221
          %s223 = smul.u32 4, %s15
        $region40: #{tpu_custom_call.1} parent=31 // pred_fallthru
          _
      $region32: #{tpu_custom_call.1} parent=5 // pred_fallthru
        _
      %p224 = scmp.le.s32.totalorder 1, %s15
      %p225 = scmp.lt.s32.totalorder %s15, 3
      %p226 = pnand %p224, %p225
      %p227 = pneg %p226
      // Predicated region
      $region41: #{tpu_custom_call.1} parent=5 // pred_check
        _
      $region42: #{tpu_custom_call.1} parent=5 // pred_check_branch
        %229 = sbr.rel (%p226) target = $region44
      $region43: #{tpu_custom_call.1} parent=5 // pred_region
        %s230 = ssub.s32 %s15, 1
        %p231 = scmp.lt.s32.totalorder %s20, 1
        %s232 = scalar_select %p231, %s20, 1
        %s233 = smul.addr %s232, 8
        %s234 = scalar_lea.vmem %s0, %s233
        %p235 = pneg %p41
        %p236 = pneg %p38
        %s237 = smul.u32 4, %s20
        %p238 = scmp.lt.s32.totalorder %s237, 7
        %s239 = scalar_select %p238, %s237, 7
        %s240 = smul.addr %s239, 8
        %s241 = scalar_lea.vmem %s1, %s240
        %p242 = pneg %p67
        %p243 = pneg %p64
        %p244 = pneg %p88
        %p245 = pneg %p85
        %p246 = pneg %p109
        %p247 = pneg %p106
        %p248 = pneg %p130
        %p249 = pneg %p127
        %p250 = pneg %p151
        %p251 = pneg %p148
        %p252 = pneg %p177
        %p253 = pneg %p174
        %s254 = sand.u32 %s164, 1
        %s255 = scalar_lea.sflag [#allocation3], %s254
        %s256 = sand.u32 %s164, 1
        %s257 = smul.addr %s256, 16
        %s258 = scalar_lea.vmem [#allocation2], %s257
        %p259 = scmp.lt.s32.totalorder %s20, 1
        %s260 = scalar_select %p259, %s20, 1
        %s261 = smul.addr %s260, 8
        %s262 = scalar_lea.vmem %s0, %s261
        %s263 = smul.u32 4, %s20
        %p264 = scmp.lt.s32.totalorder %s263, 7
        %s265 = scalar_select %p264, %s263, 7
        %s266 = smul.addr %s265, 8
        %s267 = scalar_lea.vmem %s1, %s266
        %s268 = smul.u32 4, %s20
        %s269 = smul.u32 4, %s20
        %v271 = vld [vmem:[%s262] sm:$0xff]
        %v272 = vunpack.c.l.s8.bf16 %v271
        %v273 = vunpack.c.h.s8.bf16 %v271
        %v274 = vld [vmem:[%s2] sm:$0xf]
        %v275 = vld [vmem:[%s2 + $0x4] sm:$0xf]
        %v276 = vld [vmem:[%s2 + $0x8] sm:$0xf]
        %v277 = vld [vmem:[%s2 + $0xc] sm:$0xf]
        %v278 = vld [vmem:[%s2 + $0x10] sm:$0xf]
        %v279 = vld [vmem:[%s2 + $0x14] sm:$0xf]
        %v280 = vld [vmem:[%s2 + $0x18] sm:$0xf]
        %v281 = vld [vmem:[%s2 + $0x1c] sm:$0xf]
        %v290 = vunpack.c.l.b16 %v274
        %v291 = vunpack.c.l.b16 %v275
        %v292 = vunpack.c.l.b16 %v276
        %v293 = vunpack.c.l.b16 %v277
        %v294 = vunpack.c.l.b16 %v278
        %v295 = vunpack.c.l.b16 %v279
        %v296 = vunpack.c.l.b16 %v280
        %v297 = vunpack.c.l.b16 %v281
        %v298 = vpack.c.b16 %v291, %v290
        %v299 = vpack.c.b16 %v293, %v292
        %v300 = vpack.c.b16 %v295, %v294
        %v301 = vpack.c.b16 %v297, %v296
        %vm306 = vcmask 523264
        %v308 = vsel %vm306, %v272, 0
        %v311 = vsel %vm306, %v273, 0
        %313 = vmatprep.subr.bf16.mxu0 0
        %314 = vmatpush1.bf16.msra.mxu0 0
        %315 = vmatprep.subr.bf16.mxu0 0
        %316 = vmatpush1.bf16.msra.mxu0 0
        %317 = vmatprep.subr.bf16.mxu0 0
        %318 = vmatpush1.bf16.msra.mxu0 0
        %319 = vmatprep.subr.bf16.mxu0 0
        %320 = vmatpush1.bf16.msra.mxu0 0
        %321 = vmatprep.subr.bf16.mxu0 0
        %322 = vmatpush1.bf16.msra.mxu0 %v301
        %323 = vmatprep.subr.bf16.mxu0 0
        %324 = vmatpush1.bf16.msra.mxu0 %v300
        %325 = vmatprep.subr.bf16.mxu0 0
        %326 = vmatpush1.bf16.msra.mxu0 %v299
        %327 = vmatprep.subr.bf16.mxu0 0
        %328 = vmatpush1.bf16.msra.mxu0 %v298
        %329 = vmatprep.subr.bf16.mxu0 0
        %330 = vmatpush2.bf16.msra.mxu0 0
        %331 = vmatprep.subr.bf16.mxu0 0
        %332 = vmatpush2.bf16.msra.mxu0 0
        %333 = vmatprep.subr.bf16.mxu0 0
        %334 = vmatpush2.bf16.msra.mxu0 0
        %335 = vmatprep.subr.bf16.mxu0 0
        %336 = vmatpush2.bf16.msra.mxu0 0
        %337 = vmatprep.subr.bf16.mxu0 0
        %338 = vmatpush2.bf16.msra.mxu0 0
        %339 = vmatprep.subr.bf16.mxu0 0
        %340 = vmatpush2.bf16.msra.mxu0 0
        %341 = vmatprep.subr.bf16.mxu0 0
        %342 = vmatpush2.bf16.msra.mxu0 0
        %343 = vmatprep.subr.bf16.mxu0 0
        %344 = vmatpush2.bf16.msra.mxu0 0
        %345 = vmatprep.mubr.bf16.mxu0 0
        %346 = vmatmul.mubr.bf16.gmra.mxu0 %v308
        %v347 = vpop.f32.mrf.mxu0
        %v348 = vadd.f32 0.0, %v347
        %v349 = vpop.f32.mrf.mxu0
        %v350 = vpop.f32.mrf.mxu0
        %v351 = vadd.f32 0.0, %v350
        %v352 = vpop.f32.mrf.mxu0
        %353 = vmatprep.mubr.bf16.mxu0 0
        %354 = vmatmul.mubr.bf16.gmra.mxu0 %v311
        %v355 = vpop.f32.mrf.mxu0
        %v356 = vadd.f32 0.0, %v355
        %v357 = vpop.f32.mrf.mxu0
        %v358 = vpop.f32.mrf.mxu0
        %v359 = vadd.f32 0.0, %v358
        %v360 = vpop.f32.mrf.mxu0
        %361 = vdwg.mxu0
        %v362 = vrcp.pop %v348
        %v363 = vrcp.pop %v351
        %v364 = vrcp.pop %v356
        %v365 = vrcp.pop %v359
        %v366 = vld [vmem:[%s3] sm:$0x3]
        %371 = vrot.lane.b32.xlu0 %v362, 96
        %v372 = vpop.permute.xlu0 %371
        %373 = vrot.lane.b32.xlu0 %v363, 96
        %v374 = vpop.permute.xlu0 %373
        %375 = vrot.lane.b32.xlu0 %v364, 96
        %v376 = vpop.permute.xlu0 %375
        %377 = vrot.lane.b32.xlu0 %v365, 96
        %v378 = vpop.permute.xlu0 %377
        %vm379 = vcmask 15360
        %v380 = vsel %vm379, %v372, 0
        %v382 = vsel %vm379, %v374, 0
        %v384 = vsel %vm379, %v376, 0
        %v386 = vsel %vm379, %v378, 0
        %vm388 = vcmask 1041408
        %v390 = vsel %vm388, %v366, 0
        %392 = vmatprep.subr.mxu0 0.0
        %393 = vmatpush1.msra.mxu0 0.0
        %394 = vmatprep.subr.mxu0 0.0
        %395 = vmatpush1.msra.mxu0 0.0
        %396 = vmatprep.subr.mxu0 0.0
        %397 = vmatpush1.msra.mxu0 0.0
        %398 = vmatprep.subr.mxu0 0.0
        %399 = vmatpush1.msra.mxu0 0.0
        %400 = vmatprep.subr.mxu0 0.0
        %401 = vmatpush1.msra.mxu0 0.0
        %402 = vmatprep.subr.mxu0 0.0
        %403 = vmatpush1.msra.mxu0 0.0
        %404 = vmatprep.subr.mxu0 0.0
        %405 = vmatpush1.msra.mxu0 0.0
        %406 = vmatprep.subr.mxu0 0.0
        %407 = vmatpush1.msra.mxu0 0.0
        %408 = vmatprep.subr.mxu0 0.0
        %409 = vmatpush1.msra.mxu0 0.0
        %410 = vmatprep.subr.mxu0 0.0
        %411 = vmatpush1.msra.mxu0 0.0
        %412 = vmatprep.subr.mxu0 0.0
        %413 = vmatpush1.msra.mxu0 0.0
        %414 = vmatprep.subr.mxu0 0.0
        %415 = vmatpush1.msra.mxu0 0.0
        %416 = vmatprep.subr.mxu0 0.0
        %417 = vmatpush1.msra.mxu0 0.0
        %418 = vmatprep.subr.mxu0 0.0
        %419 = vmatpush1.msra.mxu0 0.0
        %420 = vmatprep.subr.mxu0 0.0
        %421 = vmatpush1.msra.mxu0 0.0
        %422 = vmatprep.subr.mxu0 0.0
        %423 = vmatpush1.msra.mxu0 %v390
        %424 = vmatprep.subr.mxu0 0.0
        %425 = vmatpush2.msra.mxu0 0.0
        %426 = vmatprep.subr.mxu0 0.0
        %427 = vmatpush2.msra.mxu0 0.0
        %428 = vmatprep.subr.mxu0 0.0
        %429 = vmatpush2.msra.mxu0 0.0
        %430 = vmatprep.subr.mxu0 0.0
        %431 = vmatpush2.msra.mxu0 0.0
        %432 = vmatprep.subr.mxu0 0.0
        %433 = vmatpush2.msra.mxu0 0.0
        %434 = vmatprep.subr.mxu0 0.0
        %435 = vmatpush2.msra.mxu0 0.0
        %436 = vmatprep.subr.mxu0 0.0
        %437 = vmatpush2.msra.mxu0 0.0
        %438 = vmatprep.subr.mxu0 0.0
        %439 = vmatpush2.msra.mxu0 0.0
        %440 = vmatprep.subr.mxu0 0.0
        %441 = vmatpush2.msra.mxu0 0.0
        %442 = vmatprep.subr.mxu0 0.0
        %443 = vmatpush2.msra.mxu0 0.0
        %444 = vmatprep.subr.mxu0 0.0
        %445 = vmatpush2.msra.mxu0 0.0
        %446 = vmatprep.subr.mxu0 0.0
        %447 = vmatpush2.msra.mxu0 0.0
        %448 = vmatprep.subr.mxu0 0.0
        %449 = vmatpush2.msra.mxu0 0.0
        %450 = vmatprep.subr.mxu0 0.0
        %451 = vmatpush2.msra.mxu0 0.0
        %452 = vmatprep.subr.mxu0 0.0
        %453 = vmatpush2.msra.mxu0 0.0
        %454 = vmatprep.subr.mxu0 0.0
        %455 = vmatpush2.msra.mxu0 0.0
        %456 = vmatprep.mubr.f32.mxu0 0.0
        %457 = vmatmul.mubr.f32.gmra.mxu0 %v380
        %v458 = vpop.f32.mrf.mxu0
        %v459 = vadd.f32 0.0, %v458
        %v460 = vpop.f32.mrf.mxu0
        %461 = vmatprep.mubr.f32.mxu0 0.0
        %462 = vmatmul.mubr.f32.gmra.mxu0 %v382
        %v463 = vpop.f32.mrf.mxu0
        %v464 = vadd.f32 0.0, %v463
        %v465 = vpop.f32.mrf.mxu0
        %466 = vmatprep.mubr.f32.mxu0 0.0
        %467 = vmatmul.mubr.f32.gmra.mxu0 %v384
        %v468 = vpop.f32.mrf.mxu0
        %v469 = vadd.f32 0.0, %v468
        %v470 = vpop.f32.mrf.mxu0
        %471 = vmatprep.mubr.f32.mxu0 0.0
        %472 = vmatmul.mubr.f32.gmra.mxu0 %v386
        %v473 = vpop.f32.mrf.mxu0
        %v474 = vadd.f32 0.0, %v473
        %v475 = vpop.f32.mrf.mxu0
        %476 = vdwg.mxu0
        %v477 = vmul.f32 %v348, %v459
        %v478 = vmul.f32 %v351, %v464
        %v479 = vmul.f32 %v356, %v469
        %v480 = vmul.f32 %v359, %v474
        %v481 = vld [vmem:[%s267] sm:$0xff]
        %v482 = vld [vmem:[%s267 + $0x8] sm:$0xff]
        %v483 = vld [vmem:[%s267 + $0x10] sm:$0xff]
        %v484 = vld [vmem:[%s267 + $0x18] sm:$0xff]
        %v485 = vld [vmem:[%s4] sm:$0xff]
        %v486 = vld [vmem:[%s4 + $0x8] sm:$0xff]
        %vm487 = vcmask 130048
        %v489 = vsel %vm487, %v481, 0
        %v492 = vsel %vm487, %v482, 0
        %v495 = vsel %vm487, %v483, 0
        %v498 = vsel %vm487, %v484, 0
        %500 = vmatprep.subr.mxu0 0.0
        %501 = vmatpush1.msra.mxu0 0.0
        %502 = vmatprep.subr.mxu0 0.0
        %503 = vmatpush1.msra.mxu0 0.0
        %504 = vmatprep.subr.mxu0 0.0
        %505 = vmatpush1.msra.mxu0 0.0
        %506 = vmatprep.subr.mxu0 0.0
        %507 = vmatpush1.msra.mxu0 0.0
        %508 = vmatprep.subr.mxu0 0.0
        %509 = vmatpush1.msra.mxu0 0.0
        %510 = vmatprep.subr.mxu0 0.0
        %511 = vmatpush1.msra.mxu0 0.0
        %512 = vmatprep.subr.mxu0 0.0
        %513 = vmatpush1.msra.mxu0 0.0
        %514 = vmatprep.subr.mxu0 0.0
        %515 = vmatpush1.msra.mxu0 0.0
        %516 = vmatprep.subr.mxu0 0.0
        %517 = vmatpush1.msra.mxu0 0.0
        %518 = vmatprep.subr.mxu0 0.0
        %519 = vmatpush1.msra.mxu0 0.0
        %520 = vmatprep.subr.mxu0 0.0
        %521 = vmatpush1.msra.mxu0 0.0
        %522 = vmatprep.subr.mxu0 0.0
        %523 = vmatpush1.msra.mxu0 0.0
        %524 = vmatprep.subr.mxu0 0.0
        %525 = vmatpush1.msra.mxu0 0.0
        %526 = vmatprep.subr.mxu0 0.0
        %527 = vmatpush1.msra.mxu0 0.0
        %528 = vmatprep.subr.mxu0 0.0
        %529 = vmatpush1.msra.mxu0 %v486
        %530 = vmatprep.subr.mxu0 0.0
        %531 = vmatpush1.msra.mxu0 %v485
        %532 = vmatprep.subr.mxu0 0.0
        %533 = vmatpush2.msra.mxu0 0.0
        %534 = vmatprep.subr.mxu0 0.0
        %535 = vmatpush2.msra.mxu0 0.0
        %536 = vmatprep.subr.mxu0 0.0
        %537 = vmatpush2.msra.mxu0 0.0
        %538 = vmatprep.subr.mxu0 0.0
        %539 = vmatpush2.msra.mxu0 0.0
        %540 = vmatprep.subr.mxu0 0.0
        %541 = vmatpush2.msra.mxu0 0.0
        %542 = vmatprep.subr.mxu0 0.0
        %543 = vmatpush2.msra.mxu0 0.0
        %544 = vmatprep.subr.mxu0 0.0
        %545 = vmatpush2.msra.mxu0 0.0
        %546 = vmatprep.subr.mxu0 0.0
        %547 = vmatpush2.msra.mxu0 0.0
        %548 = vmatprep.subr.mxu0 0.0
        %549 = vmatpush2.msra.mxu0 0.0
        %550 = vmatprep.subr.mxu0 0.0
        %551 = vmatpush2.msra.mxu0 0.0
        %552 = vmatprep.subr.mxu0 0.0
        %553 = vmatpush2.msra.mxu0 0.0
        %554 = vmatprep.subr.mxu0 0.0
        %555 = vmatpush2.msra.mxu0 0.0
        %556 = vmatprep.subr.mxu0 0.0
        %557 = vmatpush2.msra.mxu0 0.0
        %558 = vmatprep.subr.mxu0 0.0
        %559 = vmatpush2.msra.mxu0 0.0
        %560 = vmatprep.subr.mxu0 0.0
        %561 = vmatpush2.msra.mxu0 0.0
        %562 = vmatprep.subr.mxu0 0.0
        %563 = vmatpush2.msra.mxu0 0.0
        %564 = vmatprep.mubr.f32.mxu0 0.0
        %565 = vmatmul.mubr.f32.gmra.mxu0 %v489
        %v566 = vpop.f32.mrf.mxu0
        %v567 = vadd.f32 %v477, %v566
        %v568 = vpop.f32.mrf.mxu0
        %569 = vmatprep.mubr.f32.mxu0 0.0
        %570 = vmatmul.mubr.f32.gmra.mxu0 %v492
        %v571 = vpop.f32.mrf.mxu0
        %v572 = vadd.f32 %v478, %v571
        %v573 = vpop.f32.mrf.mxu0
        %574 = vmatprep.mubr.f32.mxu0 0.0
        %575 = vmatmul.mubr.f32.gmra.mxu0 %v495
        %v576 = vpop.f32.mrf.mxu0
        %v577 = vadd.f32 %v479, %v576
        %v578 = vpop.f32.mrf.mxu0
        %579 = vmatprep.mubr.f32.mxu0 0.0
        %580 = vmatmul.mubr.f32.gmra.mxu0 %v498
        %v581 = vpop.f32.mrf.mxu0
        %v582 = vadd.f32 %v480, %v581
        %v583 = vpop.f32.mrf.mxu0
        %584 = vdwg.mxu0
        %v585 = vld [vmem:[%s5] sm:$0x1]
        %v587 = vlaneseq
        %v588 = vshrl.u32 %v587, 7
        %v589 = vsub.s32 0, %v588
        %v590 = vrot.slane %v585, %v589
        %v592 = vadd.f32 %v567, %v590
        %v593 = vadd.f32 %v572, %v590
        %v594 = vadd.f32 %v577, %v590
        %v595 = vadd.f32 %v582, %v590
        %v596 = vmax.f32 %v592, 0.0
        %v597 = vmax.f32 %v593, 0.0
        %v598 = vmax.f32 %v594, 0.0
        %v599 = vmax.f32 %v595, 0.0
        %v600 = vpack.c.bf16 %v597, %v596
        %v601 = vpack.c.bf16 %v599, %v598
        %v604 = vunpack.c.l.b16 %v600
        %v605 = vunpack.c.h.b16 %v600
        %v606 = vunpack.c.l.b16 %v601
        %v607 = vunpack.c.h.b16 %v601
        %v608 = vpack.c.b16 %v604, %v604
        %v609 = vpack.c.b16 %v605, %v605
        %v610 = vpack.c.b16 %v606, %v606
        %v611 = vpack.c.b16 %v607, %v607
        %616 = vst [vmem:[%s258] sm:$0xf] %v608
        %617 = vst [vmem:[%s258 + $0x4] sm:$0xf] %v609
        %618 = vst [vmem:[%s258 + $0x8] sm:$0xf] %v610
        %619 = vst [vmem:[%s258 + $0xc] sm:$0xf] %v611
        %s620 = sand.u32 %s164, 1
        %s621 = scalar_lea.sflag [#allocation3], %s620
        %s622 = sand.u32 %s164, 1
        %s623 = smul.addr %s622, 16
        %s624 = scalar_lea.vmem [#allocation2], %s623
        // Predicated region
        $region45: #{tpu_custom_call.1} parent=43 // pred_check
          %p625 = pneg %p174
        $region46: #{tpu_custom_call.1} parent=43 // pred_check_branch
          %627 = sbr.rel (%p625) target = $region48
        $region47: #{tpu_custom_call.1} parent=43 // pred_region
          %s628 = smul.u32 4, %s20
          %s630 = ssub.s32 256, 256
          %631 = vsyncadd %s621, %s630
          %s632 = smul.addr %s628, 64
          %s633 = scalar_lea.hbm %s6, %s632
          %s634 = sshll.u32 %s624, 4
          %s635 = int_to_ptr.vmem [resolvable:$true] %s634
          %640 = dma.vmem_to_hbm [thread:$0]  %s635, 256, %s633, %s621, 64, 64, 4
        $region48: #{tpu_custom_call.1} parent=43 // pred_fallthru
          _
      $region44: #{tpu_custom_call.1} parent=5 // pred_fallthru
        _
      %p641 = scmp.le.s32.totalorder 2, %s15
      // Predicated region
      $region49: #{tpu_custom_call.1} parent=5 // pred_check
        %p642 = pneg %p641
      $region50: #{tpu_custom_call.1} parent=5 // pred_check_branch
        %644 = sbr.rel (%p642) target = $region52
      $region51: #{tpu_custom_call.1} parent=5 // pred_region
        %s645 = ssub.s32 %s15, 2
        // Predicated region
        $region53: #{tpu_custom_call.1} parent=51 // pred_check
          %p646 = pneg %p180
        $region54: #{tpu_custom_call.1} parent=51 // pred_check_branch
          %648 = sbr.rel (%p646) target = $region56
        $region55: #{tpu_custom_call.1} parent=51 // pred_region
          %s649 = sand.u32 %s165, 1
          %s650 = scalar_lea.sflag [#allocation3], %s649
          %s651 = sand.u32 %s165, 1
          %s652 = smul.addr %s651, 16
          %s653 = scalar_lea.vmem [#allocation2], %s652
          %654 = dma.done %s650, 256
        $region56: #{tpu_custom_call.1} parent=51 // pred_fallthru
          _
      $region52: #{tpu_custom_call.1} parent=5 // pred_fallthru
        _
    $region6: #{tpu_custom_call.1} parent=1 // loop_footer
      %s19 = sadd.s32 1, %s15
    $region7: #{tpu_custom_call.1} parent=1 // loop_footer_branch
      %14 = sbr.rel target = $region3
    $region8: #{tpu_custom_call.1} parent=1 // loop_exit
      _
    %655 = vsyncpa [#allocation3], 1
    %s656 = scalar_lea.sflag [#allocation3], 1
    %657 = vsyncpa %s656, 1

</llo_original>
